<compile_context>
chip_gen: v7x
topology: tpu7x:2x2x1
jax: 0.10.0
libtpu: 0.0.40
codegen_flags: <defaults>
</compile_context>

<pallas_src>
import jax
import jax.numpy as jnp
from jax.experimental import pallas as pl
from jax.experimental.pallas import tpu as pltpu


def mlp_kernel(x_ref, w1_ref, b1_ref, w2_ref, b2_ref, w3_ref, b3_ref, o_ref):
    # Layer 1: bf16 x-tile @ bf16 W1' -> f32 accumulate on the MXU.
    # (2*x - 1 is already folded into w1/b1 by the wrapper.)
    h1 = jnp.dot(x_ref[...], w1_ref[...], preferred_element_type=jnp.float32)
    h1 = jnp.maximum(h1 + b1_ref[...], 0.0)
    # Layers 2/3 are tiny (K,N <= 16); keep everything f32.
    h2 = jnp.dot(h1, w2_ref[...], preferred_element_type=jnp.float32)
    h2 = jnp.maximum(h2 + b2_ref[...], 0.0)
    logits = jnp.dot(h2, w3_ref[...], preferred_element_type=jnp.float32) + b3_ref[...]
    o_ref[...] = jax.nn.sigmoid(logits)


def _round_up(x, m):
    return pl.cdiv(x, m) * m


def net_forward(x, params, *, tb=1024):
    """Pallas forward of Net: sigmoid(ln3(relu(ln2(relu(ln1(2x-1))))))."""
    (w1, b1), (w2, b2), (w3, b3) = params
    n, in_f = x.shape
    out_f = w3.shape[1]

    # Fold the 2*x - 1 prelude into layer 1:
    #   (2x - 1) @ W1 + b1 == x @ (2*W1) + (b1 - ones @ W1)
    w1_folded = 2.0 * w1
    b1_folded = b1 - jnp.sum(w1, axis=0, keepdims=True)

    # bf16 for the one large array (x) and its matching weight; rest stays f32.
    x_lo = x.astype(jnp.bfloat16)
    w1_lo = w1_folded.astype(jnp.bfloat16)

    # Batch tiling: granularity 16 keeps the sublane axis legal for both the
    # bf16 input tile and the f32 output tile; feature dims are full-array.
    tb_eff = min(_round_up(tb, 16), _round_up(n, 16))
    n_pad = _round_up(n, tb_eff)
    if n_pad != n:
        x_lo = jnp.pad(x_lo, ((0, n_pad - n), (0, 0)))
    grid = (n_pad // tb_eff,)

    # Constant index_map -> the (tiny) params are DMA'd once, not per step.
    wspec = lambda arr: pl.BlockSpec(arr.shape, lambda i: (0, 0))

    out = pl.pallas_call(
        mlp_kernel,
        out_shape=jax.ShapeDtypeStruct((n_pad, out_f), jnp.float32),
        grid_spec=pltpu.PrefetchScalarGridSpec(
            num_scalar_prefetch=0,
            grid=grid,
            in_specs=[
                pl.BlockSpec((tb_eff, in_f), lambda i: (i, 0)),  # x tile over batch
                wspec(w1_lo), wspec(b1_folded),
                wspec(w2), wspec(b2),
                wspec(w3), wspec(b3),
            ],
            out_specs=pl.BlockSpec((tb_eff, out_f), lambda i: (i, 0)),
        ),
        compiler_params=pltpu.CompilerParams(
            dimension_semantics=("parallel",)),
    )(x_lo, w1_lo, b1_folded, w2, b2, w3, b3)
    return out[:n]


def init_linear(key, in_f, out_f):
    """Deterministic init mimicking torch.nn.Linear default
    (U[-1/sqrt(fan_in), 1/sqrt(fan_in)]).  Weight returned already transposed
    to (in_f, out_f)."""
    kw, kb = jax.random.split(key)
    bound = 1.0 / jnp.sqrt(float(in_f))
    w = jax.random.uniform(kw, (in_f, out_f), jnp.float32, -bound, bound)
    b = jax.random.uniform(kb, (1, out_f), jnp.float32, -bound, bound)
    return w, b


if __name__ == "__main__":
    input_size = 32
    output_size = 8

    root = jax.random.PRNGKey(0)
    kx, k1, k2, k3 = jax.random.split(root, 4)

    params = (
        init_linear(k1, input_size, 16),
        init_linear(k2, 16, 16),
        init_linear(k3, 16, output_size),
    )

    def ref_forward(x):
        # Plain-JAX / f32 reference matching the PyTorch forward exactly.
        (w1, b1), (w2, b2), (w3, b3) = params
        h = 2.0 * x - 1.0
        h = jnp.maximum(h @ w1 + b1, 0.0)
        h = jnp.maximum(h @ w2 + b2, 0.0)
        return jax.nn.sigmoid(h @ w3 + b3)

    # Case 1: small batch -> single grid step (whole problem resident).
    x_small = jax.random.uniform(kx, (64, input_size), jnp.float32)
    out_small = jax.block_until_ready(net_forward(x_small, params, tb=1024))
    assert out_small.shape == (64, output_size)
    assert jnp.allclose(out_small, ref_forward(x_small), atol=1e-2)

    # Case 2: batch not divisible by the tile -> cdiv grid + padded tail.
    x_tail = jax.random.uniform(jax.random.fold_in(kx, 1),
                                (1000, input_size), jnp.float32)
    out_tail = jax.block_until_ready(net_forward(x_tail, params, tb=256))
    assert out_tail.shape == (1000, output_size)
    assert jnp.allclose(out_tail, ref_forward(x_tail), atol=1e-2)

    print("KERNEL_OK")
</pallas_src>

<mosaic_0001>
module attributes {stable_mosaic.version = 11 : i64} {
  func.func @mlp_kernel(%arg0: i32, %arg1: memref<64x32xbf16, #tpu.memory_space<vmem>>, %arg2: memref<32x16xbf16, #tpu.memory_space<vmem>>, %arg3: memref<1x16xf32, #tpu.memory_space<vmem>>, %arg4: memref<16x16xf32, #tpu.memory_space<vmem>>, %arg5: memref<1x16xf32, #tpu.memory_space<vmem>>, %arg6: memref<16x8xf32, #tpu.memory_space<vmem>>, %arg7: memref<1x8xf32, #tpu.memory_space<vmem>>, %arg8: memref<64x8xf32, #tpu.memory_space<vmem>>) attributes {dimension_semantics = [#tpu.dimension_semantics<parallel>], iteration_bounds = array<i64: 1>, scalar_prefetch = 0 : i64, scratch_operands = 0 : i64, tpu.core_type = #tpu.core_type<tc>, window_params = [{transform_indices = @transform_0, window_bounds = array<i64: 64, 32>}, {pipeline_mode = #tpu.pipeline_mode<synchronous>, transform_indices = @transform_1, window_bounds = array<i64: 32, 16>}, {pipeline_mode = #tpu.pipeline_mode<synchronous>, transform_indices = @transform_2, window_bounds = array<i64: 1, 16>}, {pipeline_mode = #tpu.pipeline_mode<synchronous>, transform_indices = @transform_3, window_bounds = array<i64: 16, 16>}, {pipeline_mode = #tpu.pipeline_mode<synchronous>, transform_indices = @transform_4, window_bounds = array<i64: 1, 16>}, {pipeline_mode = #tpu.pipeline_mode<synchronous>, transform_indices = @transform_5, window_bounds = array<i64: 16, 8>}, {pipeline_mode = #tpu.pipeline_mode<synchronous>, transform_indices = @transform_6, window_bounds = array<i64: 1, 8>}, {transform_indices = @transform_7, window_bounds = array<i64: 64, 8>}]} {
    %c0 = arith.constant 0 : index
    %c0_0 = arith.constant 0 : index
    %0 = vector.load %arg1[%c0, %c0_0] : memref<64x32xbf16, #tpu.memory_space<vmem>>, vector<64x32xbf16>
    %c0_1 = arith.constant 0 : index
    %c0_2 = arith.constant 0 : index
    %1 = vector.load %arg2[%c0_1, %c0_2] : memref<32x16xbf16, #tpu.memory_space<vmem>>, vector<32x16xbf16>
    %cst = arith.constant dense<0.000000e+00> : vector<64x16xf32>
    %2 = tpu.matmul %0, %1, %cst {dimension_numbers = #tpu.dot_dimension_numbers<[1], [0], [0], [1], [0, 0, 1, 1], [], []>} : vector<64x32xbf16>, vector<32x16xbf16>, vector<64x16xf32> -> vector<64x16xf32>
    %c0_3 = arith.constant 0 : index
    %c0_4 = arith.constant 0 : index
    %3 = vector.load %arg3[%c0_3, %c0_4] : memref<1x16xf32, #tpu.memory_space<vmem>>, vector<1x16xf32>
    %4 = vector.broadcast %3 : vector<1x16xf32> to vector<64x16xf32>
    %5 = arith.addf %2, %4 : vector<64x16xf32>
    %cst_5 = arith.constant 0.000000e+00 : f32
    %6 = vector.broadcast %cst_5 : f32 to vector<64x16xf32>
    %7 = arith.maximumf %5, %6 : vector<64x16xf32>
    %c0_6 = arith.constant 0 : index
    %c0_7 = arith.constant 0 : index
    %8 = vector.load %arg4[%c0_6, %c0_7] : memref<16x16xf32, #tpu.memory_space<vmem>>, vector<16x16xf32>
    %cst_8 = arith.constant dense<0.000000e+00> : vector<64x16xf32>
    %9 = tpu.matmul %7, %8, %cst_8 {dimension_numbers = #tpu.dot_dimension_numbers<[1], [0], [0], [1], [0, 0, 1, 1], [], []>} : vector<64x16xf32>, vector<16x16xf32>, vector<64x16xf32> -> vector<64x16xf32>
    %c0_9 = arith.constant 0 : index
    %c0_10 = arith.constant 0 : index
    %10 = vector.load %arg5[%c0_9, %c0_10] : memref<1x16xf32, #tpu.memory_space<vmem>>, vector<1x16xf32>
    %11 = vector.broadcast %10 : vector<1x16xf32> to vector<64x16xf32>
    %12 = arith.addf %9, %11 : vector<64x16xf32>
    %cst_11 = arith.constant 0.000000e+00 : f32
    %13 = vector.broadcast %cst_11 : f32 to vector<64x16xf32>
    %14 = arith.maximumf %12, %13 : vector<64x16xf32>
    %c0_12 = arith.constant 0 : index
    %c0_13 = arith.constant 0 : index
    %15 = vector.load %arg6[%c0_12, %c0_13] : memref<16x8xf32, #tpu.memory_space<vmem>>, vector<16x8xf32>
    %cst_14 = arith.constant dense<0.000000e+00> : vector<64x8xf32>
    %16 = tpu.matmul %14, %15, %cst_14 {dimension_numbers = #tpu.dot_dimension_numbers<[1], [0], [0], [1], [0, 0, 1, 1], [], []>} : vector<64x16xf32>, vector<16x8xf32>, vector<64x8xf32> -> vector<64x8xf32>
    %c0_15 = arith.constant 0 : index
    %c0_16 = arith.constant 0 : index
    %17 = vector.load %arg7[%c0_15, %c0_16] : memref<1x8xf32, #tpu.memory_space<vmem>>, vector<1x8xf32>
    %18 = vector.broadcast %17 : vector<1x8xf32> to vector<64x8xf32>
    %19 = arith.addf %16, %18 : vector<64x8xf32>
    %20 = arith.negf %19 : vector<64x8xf32>
    %21 = math.exp %20 : vector<64x8xf32>
    %cst_17 = arith.constant 1.000000e+00 : f32
    %22 = vector.broadcast %cst_17 : f32 to vector<64x8xf32>
    %23 = arith.addf %22, %21 : vector<64x8xf32>
    %24 = arith.divf %22, %23 : vector<64x8xf32>
    %c0_18 = arith.constant 0 : index
    %c0_19 = arith.constant 0 : index
    %25 = vector.load %arg8[%c0_18, %c0_19] : memref<64x8xf32, #tpu.memory_space<vmem>>, vector<64x8xf32>
    tpu.vector_store %arg8[%c0_18, %c0_19], %24 {strides = array<i32>} : memref<64x8xf32, #tpu.memory_space<vmem>>, vector<64x8xf32>,
    return
  }
  func.func @transform_0(%arg0: i32) -> (i32, i32) {
    %c0_i32 = arith.constant 0 : i32
    %c0_i32_0 = arith.constant 0 : i32
    return %arg0, %c0_i32 : i32, i32
  }
  func.func @transform_1(%arg0: i32) -> (i32, i32) {
    %c0_i32 = arith.constant 0 : i32
    %c0_i32_0 = arith.constant 0 : i32
    %c0_i32_1 = arith.constant 0 : i32
    return %c0_i32, %c0_i32_0 : i32, i32
  }
  func.func @transform_2(%arg0: i32) -> (i32, i32) {
    %c0_i32 = arith.constant 0 : i32
    %c0_i32_0 = arith.constant 0 : i32
    %c0_i32_1 = arith.constant 0 : i32
    return %c0_i32, %c0_i32_0 : i32, i32
  }
  func.func @transform_3(%arg0: i32) -> (i32, i32) {
    %c0_i32 = arith.constant 0 : i32
    %c0_i32_0 = arith.constant 0 : i32
    %c0_i32_1 = arith.constant 0 : i32
    return %c0_i32, %c0_i32_0 : i32, i32
  }
  func.func @transform_4(%arg0: i32) -> (i32, i32) {
    %c0_i32 = arith.constant 0 : i32
    %c0_i32_0 = arith.constant 0 : i32
    %c0_i32_1 = arith.constant 0 : i32
    return %c0_i32, %c0_i32_0 : i32, i32
  }
  func.func @transform_5(%arg0: i32) -> (i32, i32) {
    %c0_i32 = arith.constant 0 : i32
    %c0_i32_0 = arith.constant 0 : i32
    %c0_i32_1 = arith.constant 0 : i32
    return %c0_i32, %c0_i32_0 : i32, i32
  }
  func.func @transform_6(%arg0: i32) -> (i32, i32) {
    %c0_i32 = arith.constant 0 : i32
    %c0_i32_0 = arith.constant 0 : i32
    %c0_i32_1 = arith.constant 0 : i32
    return %c0_i32, %c0_i32_0 : i32, i32
  }
  func.func @transform_7(%arg0: i32) -> (i32, i32) {
    %c0_i32 = arith.constant 0 : i32
    %c0_i32_0 = arith.constant 0 : i32
    return %arg0, %c0_i32 : i32, i32
  }
}

</mosaic_0001>

<llo_original>
// kernel: tpu_custom_call.1
$region0: #{tpu_custom_call.1}
  #allocation0 [shape = 'u32[]', space=smem, size = 0x4, offset = 0x4, fixed_abs, tag = 'smem constant byte address 0x4 - core index']
  #allocation1 [shape = 'u32[144,128]{1,0:T(1,128)}', space=vmem, size = 0x12000, scoped, tag = 'internal scratch']
  %s0 = inlined_call_operand.vmem [shape: bf16[64,32], index: 0, kind: input, shape index: {}]
  %s1 = inlined_call_operand.vmem [shape: bf16[32,16], index: 1, kind: input, shape index: {}]
  %s2 = inlined_call_operand.vmem [shape: f32[1,16], index: 2, kind: input, shape index: {}]
  %s3 = inlined_call_operand.vmem [shape: f32[16,16], index: 3, kind: input, shape index: {}]
  %s4 = inlined_call_operand.vmem [shape: f32[1,16], index: 4, kind: input, shape index: {}]
  %s5 = inlined_call_operand.vmem [shape: f32[16,8], index: 5, kind: input, shape index: {}]
  %s6 = inlined_call_operand.vmem [shape: f32[1,8], index: 6, kind: input, shape index: {}]
  %s7 = inlined_call_operand.vmem [shape: f32[64,8], index: 7, kind: output, shape index: {}]
  %s8 = sld [smem:[#allocation0]]
  $region38: #{tpu_custom_call.1} parent=0
    _
  %s10 = ssub.s32 1, %s8
  %s11 = scalar_select 0, %s10, %s8
  // Predicated region
  $region2: #{tpu_custom_call.1} parent=0 // pred_check
    _
  $region3: #{tpu_custom_call.1} parent=0 // pred_check_branch
    %13 = sbr.rel (0) target = $region5
  $region4: #{tpu_custom_call.1} parent=0 // pred_region
    _
  $region5: #{tpu_custom_call.1} parent=0 // pred_fallthru
    _
  // Predicated region
  $region6: #{tpu_custom_call.1} parent=0 // pred_check
    _
  $region7: #{tpu_custom_call.1} parent=0 // pred_check_branch
    %15 = sbr.rel (0) target = $region9
  $region8: #{tpu_custom_call.1} parent=0 // pred_region
    _
  $region9: #{tpu_custom_call.1} parent=0 // pred_fallthru
    _
  // Predicated region
  $region10: #{tpu_custom_call.1} parent=0 // pred_check
    _
  $region11: #{tpu_custom_call.1} parent=0 // pred_check_branch
    %17 = sbr.rel (0) target = $region13
  $region12: #{tpu_custom_call.1} parent=0 // pred_region
    _
  $region13: #{tpu_custom_call.1} parent=0 // pred_fallthru
    _
  // Predicated region
  $region14: #{tpu_custom_call.1} parent=0 // pred_check
    _
  $region15: #{tpu_custom_call.1} parent=0 // pred_check_branch
    %19 = sbr.rel (0) target = $region17
  $region16: #{tpu_custom_call.1} parent=0 // pred_region
    _
  $region17: #{tpu_custom_call.1} parent=0 // pred_fallthru
    _
  // Predicated region
  $region18: #{tpu_custom_call.1} parent=0 // pred_check
    _
  $region19: #{tpu_custom_call.1} parent=0 // pred_check_branch
    %21 = sbr.rel (0) target = $region21
  $region20: #{tpu_custom_call.1} parent=0 // pred_region
    _
  $region21: #{tpu_custom_call.1} parent=0 // pred_fallthru
    _
  // Predicated region
  $region22: #{tpu_custom_call.1} parent=0 // pred_check
    _
  $region23: #{tpu_custom_call.1} parent=0 // pred_check_branch
    %23 = sbr.rel (0) target = $region25
  $region24: #{tpu_custom_call.1} parent=0 // pred_region
    _
  $region25: #{tpu_custom_call.1} parent=0 // pred_fallthru
    _
  // Predicated region
  $region26: #{tpu_custom_call.1} parent=0 // pred_check
    _
  $region27: #{tpu_custom_call.1} parent=0 // pred_check_branch
    %25 = sbr.rel (0) target = $region29
  $region28: #{tpu_custom_call.1} parent=0 // pred_region
    _
  $region29: #{tpu_custom_call.1} parent=0 // pred_fallthru
    _
  %v27 = vld [vmem:[%s0] sm:$0xf]
  %v28 = vld [vmem:[%s0 + $0x4] sm:$0xf]
  %v29 = vld [vmem:[%s0 + $0x8] sm:$0xf]
  %v30 = vld [vmem:[%s0 + $0xc] sm:$0xf]
  %v31 = vld [vmem:[%s0 + $0x10] sm:$0xf]
  %v32 = vld [vmem:[%s0 + $0x14] sm:$0xf]
  %v33 = vld [vmem:[%s0 + $0x18] sm:$0xf]
  %v34 = vld [vmem:[%s0 + $0x1c] sm:$0xf]
  %v35 = vld [vmem:[%s1] sm:$0xf]
  %v36 = vld [vmem:[%s1 + $0x4] sm:$0xf]
  %v37 = vld [vmem:[%s1 + $0x8] sm:$0xf]
  %v38 = vld [vmem:[%s1 + $0xc] sm:$0xf]
  %v39 = vld [vmem:[%s2] sm:$0x1]
  %v41 = vlaneseq
  %v42 = vshrl.u32 %v41, 7
  %v43 = vsub.s32 0, %v42
  %v44 = vrot.slane %v39, %v43
  %v54 = vunpack.c.l.b16 %v27
  %v55 = vunpack.c.l.b16 %v28
  %v56 = vunpack.c.l.b16 %v29
  %v57 = vunpack.c.l.b16 %v30
  %v58 = vunpack.c.l.b16 %v31
  %v59 = vunpack.c.l.b16 %v32
  %v60 = vunpack.c.l.b16 %v33
  %v61 = vunpack.c.l.b16 %v34
  %v62 = vpack.c.b16 %v55, %v54
  %v63 = vpack.c.b16 %v57, %v56
  %v64 = vpack.c.b16 %v59, %v58
  %v65 = vpack.c.b16 %v61, %v60
  %v70 = vunpack.c.l.b16 %v35
  %v71 = vunpack.c.l.b16 %v36
  %v72 = vunpack.c.l.b16 %v37
  %v73 = vunpack.c.l.b16 %v38
  %v74 = vpack.c.b16 %v71, %v70
  %v75 = vpack.c.b16 %v73, %v72
  %vm78 = vcmask 261120
  %v80 = vsel %vm78, %v62, 0
  %v83 = vsel %vm78, %v63, 0
  %v86 = vsel %vm78, %v64, 0
  %v89 = vsel %vm78, %v65, 0
  %91 = vmatprep.subr.bf16.mxu0 0
  %92 = vmatpush1.bf16.msra.mxu0 %v74
  %93 = vmatprep.subr.bf16.mxu0 0
  %94 = vmatpush1.bf16.msra.mxu0 %v75
  %95 = vmatprep.subr.bf16.mxu0 0
  %96 = vmatpush1.bf16.msra.mxu0 0
  %97 = vmatprep.subr.bf16.mxu0 0
  %98 = vmatpush1.bf16.msra.mxu0 0
  %99 = vmatprep.subr.bf16.mxu0 0
  %100 = vmatpush1.bf16.msra.mxu0 0
  %101 = vmatprep.subr.bf16.mxu0 0
  %102 = vmatpush1.bf16.msra.mxu0 0
  %103 = vmatprep.subr.bf16.mxu0 0
  %104 = vmatpush1.bf16.msra.mxu0 0
  %105 = vmatprep.subr.bf16.mxu0 0
  %106 = vmatpush1.bf16.msra.mxu0 0
  %107 = vmatprep.subr.bf16.mxu0 0
  %108 = vmatpush1.bf16.msra.mxu0 0
  %109 = vmatprep.subr.bf16.mxu0 0
  %110 = vmatpush1.bf16.msra.mxu0 0
  %111 = vmatprep.subr.bf16.mxu0 0
  %112 = vmatpush1.bf16.msra.mxu0 0
  %113 = vmatprep.subr.bf16.mxu0 0
  %114 = vmatpush1.bf16.msra.mxu0 0
  %115 = vmatprep.subr.bf16.mxu0 0
  %116 = vmatpush1.bf16.msra.mxu0 0
  %117 = vmatprep.subr.bf16.mxu0 0
  %118 = vmatpush1.bf16.msra.mxu0 0
  %119 = vmatprep.subr.bf16.mxu0 0
  %120 = vmatpush1.bf16.msra.mxu0 0
  %121 = vmatprep.subr.bf16.mxu0 0
  %122 = vmatpush1.bf16.msra.mxu0 0
  %123 = vmatprep.mubr.bf16.mxu0 0
  %124 = vmatmul.mubr.bf16.gmra.mrb[0].mxu0 %v80
  %v125 = vpop.f32.mrb[0].mxu0
  %v126 = vadd.f32 %v44, %v125
  %v127 = vpop.f32.mrb[0].mxu0
  %v128 = vpop.f32.mrb[0].mxu0
  %v129 = vadd.f32 %v44, %v128
  %v130 = vpop.f32.mrb[0].mxu0
  %131 = vmatprep.mubr.bf16.mxu0 0
  %132 = vmatmul.mubr.bf16.gmra.mrb[0].mxu0 %v83
  %v133 = vpop.f32.mrb[0].mxu0
  %v134 = vadd.f32 %v44, %v133
  %v135 = vpop.f32.mrb[0].mxu0
  %v136 = vpop.f32.mrb[0].mxu0
  %v137 = vadd.f32 %v44, %v136
  %v138 = vpop.f32.mrb[0].mxu0
  %139 = vmatprep.mubr.bf16.mxu0 0
  %140 = vmatmul.mubr.bf16.gmra.mrb[0].mxu0 %v86
  %v141 = vpop.f32.mrb[0].mxu0
  %v142 = vadd.f32 %v44, %v141
  %v143 = vpop.f32.mrb[0].mxu0
  %v144 = vpop.f32.mrb[0].mxu0
  %v145 = vadd.f32 %v44, %v144
  %v146 = vpop.f32.mrb[0].mxu0
  %147 = vmatprep.mubr.bf16.mxu0 0
  %148 = vmatmul.mubr.bf16.gmra.mrb[0].mxu0 %v89
  %v149 = vpop.f32.mrb[0].mxu0
  %v150 = vadd.f32 %v44, %v149
  %v151 = vpop.f32.mrb[0].mxu0
  %v152 = vpop.f32.mrb[0].mxu0
  %v153 = vadd.f32 %v44, %v152
  %v154 = vpop.f32.mrb[0].mxu0
  %155 = vdwg.mxu0
  %v156 = vmax.f32 %v126, 0.0
  %v157 = vmax.f32 %v129, 0.0
  %v158 = vmax.f32 %v134, 0.0
  %v159 = vmax.f32 %v137, 0.0
  %v160 = vmax.f32 %v142, 0.0
  %v161 = vmax.f32 %v145, 0.0
  %v162 = vmax.f32 %v150, 0.0
  %v163 = vmax.f32 %v153, 0.0
  %v164 = vld [vmem:[%s3] sm:$0xff]
  %v165 = vld [vmem:[%s3 + $0x8] sm:$0xff]
  %v166 = vld [vmem:[%s4] sm:$0x1]
  %v168 = vlaneseq
  %v169 = vshrl.u32 %v168, 7
  %v170 = vsub.s32 0, %v169
  %v171 = vrot.slane %v166, %v170
  %vm173 = vcmask 130048
  %v175 = vsel %vm173, %v156, 0
  %v178 = vsel %vm173, %v157, 0
  %v181 = vsel %vm173, %v158, 0
  %v184 = vsel %vm173, %v159, 0
  %v187 = vsel %vm173, %v160, 0
  %v190 = vsel %vm173, %v161, 0
  %v193 = vsel %vm173, %v162, 0
  %v196 = vsel %vm173, %v163, 0
  %198 = vmatprep.subr.mxu0 0.0
  %199 = vmatpush1.msra.mxu0 %v164
  %200 = vmatprep.subr.mxu0 0.0
  %201 = vmatpush1.msra.mxu0 %v165
  %202 = vmatprep.subr.mxu0 0.0
  %203 = vmatpush1.msra.mxu0 0.0
  %204 = vmatprep.subr.mxu0 0.0
  %205 = vmatpush1.msra.mxu0 0.0
  %206 = vmatprep.subr.mxu0 0.0
  %207 = vmatpush1.msra.mxu0 0.0
  %208 = vmatprep.subr.mxu0 0.0
  %209 = vmatpush1.msra.mxu0 0.0
  %210 = vmatprep.subr.mxu0 0.0
  %211 = vmatpush1.msra.mxu0 0.0
  %212 = vmatprep.subr.mxu0 0.0
  %213 = vmatpush1.msra.mxu0 0.0
  %214 = vmatprep.subr.mxu0 0.0
  %215 = vmatpush1.msra.mxu0 0.0
  %216 = vmatprep.subr.mxu0 0.0
  %217 = vmatpush1.msra.mxu0 0.0
  %218 = vmatprep.subr.mxu0 0.0
  %219 = vmatpush1.msra.mxu0 0.0
  %220 = vmatprep.subr.mxu0 0.0
  %221 = vmatpush1.msra.mxu0 0.0
  %222 = vmatprep.subr.mxu0 0.0
  %223 = vmatpush1.msra.mxu0 0.0
  %224 = vmatprep.subr.mxu0 0.0
  %225 = vmatpush1.msra.mxu0 0.0
  %226 = vmatprep.subr.mxu0 0.0
  %227 = vmatpush1.msra.mxu0 0.0
  %228 = vmatprep.subr.mxu0 0.0
  %229 = vmatpush1.msra.mxu0 0.0
  %230 = vmatprep.subr.mxu0 0.0
  %231 = vmatpush1.msra.mxu0 0.0
  %232 = vmatprep.subr.mxu0 0.0
  %233 = vmatpush1.msra.mxu0 0.0
  %234 = vmatprep.subr.mxu0 0.0
  %235 = vmatpush1.msra.mxu0 0.0
  %236 = vmatprep.subr.mxu0 0.0
  %237 = vmatpush1.msra.mxu0 0.0
  %238 = vmatprep.subr.mxu0 0.0
  %239 = vmatpush1.msra.mxu0 0.0
  %240 = vmatprep.subr.mxu0 0.0
  %241 = vmatpush1.msra.mxu0 0.0
  %242 = vmatprep.subr.mxu0 0.0
  %243 = vmatpush1.msra.mxu0 0.0
  %244 = vmatprep.subr.mxu0 0.0
  %245 = vmatpush1.msra.mxu0 0.0
  %246 = vmatprep.subr.mxu0 0.0
  %247 = vmatpush1.msra.mxu0 0.0
  %248 = vmatprep.subr.mxu0 0.0
  %249 = vmatpush1.msra.mxu0 0.0
  %250 = vmatprep.subr.mxu0 0.0
  %251 = vmatpush1.msra.mxu0 0.0
  %252 = vmatprep.subr.mxu0 0.0
  %253 = vmatpush1.msra.mxu0 0.0
  %254 = vmatprep.subr.mxu0 0.0
  %255 = vmatpush1.msra.mxu0 0.0
  %256 = vmatprep.subr.mxu0 0.0
  %257 = vmatpush1.msra.mxu0 0.0
  %258 = vmatprep.subr.mxu0 0.0
  %259 = vmatpush1.msra.mxu0 0.0
  %260 = vmatprep.subr.mxu0 0.0
  %261 = vmatpush1.msra.mxu0 0.0
  %262 = vmatprep.mubr.f32.mxu0 0.0
  %263 = vmatmul.mubr.f32.gmra.mrb[0].mxu0 %v175
  %v264 = vpop.f32.mrb[0].mxu0
  %v265 = vadd.f32 %v171, %v264
  %v266 = vpop.f32.mrb[0].mxu0
  %267 = vmatprep.mubr.f32.mxu0 0.0
  %268 = vmatmul.mubr.f32.gmra.mrb[0].mxu0 %v178
  %v269 = vpop.f32.mrb[0].mxu0
  %v270 = vadd.f32 %v171, %v269
  %v271 = vpop.f32.mrb[0].mxu0
  %272 = vmatprep.mubr.f32.mxu0 0.0
  %273 = vmatmul.mubr.f32.gmra.mrb[0].mxu0 %v181
  %v274 = vpop.f32.mrb[0].mxu0
  %v275 = vadd.f32 %v171, %v274
  %v276 = vpop.f32.mrb[0].mxu0
  %277 = vmatprep.mubr.f32.mxu0 0.0
  %278 = vmatmul.mubr.f32.gmra.mrb[0].mxu0 %v184
  %v279 = vpop.f32.mrb[0].mxu0
  %v280 = vadd.f32 %v171, %v279
  %v281 = vpop.f32.mrb[0].mxu0
  %282 = vmatprep.mubr.f32.mxu0 0.0
  %283 = vmatmul.mubr.f32.gmra.mrb[0].mxu0 %v187
  %v284 = vpop.f32.mrb[0].mxu0
  %v285 = vadd.f32 %v171, %v284
  %v286 = vpop.f32.mrb[0].mxu0
  %287 = vmatprep.mubr.f32.mxu0 0.0
  %288 = vmatmul.mubr.f32.gmra.mrb[0].mxu0 %v190
  %v289 = vpop.f32.mrb[0].mxu0
  %v290 = vadd.f32 %v171, %v289
  %v291 = vpop.f32.mrb[0].mxu0
  %292 = vmatprep.mubr.f32.mxu0 0.0
  %293 = vmatmul.mubr.f32.gmra.mrb[0].mxu0 %v193
  %v294 = vpop.f32.mrb[0].mxu0
  %v295 = vadd.f32 %v171, %v294
  %v296 = vpop.f32.mrb[0].mxu0
  %297 = vmatprep.mubr.f32.mxu0 0.0
  %298 = vmatmul.mubr.f32.gmra.mrb[0].mxu0 %v196
  %v299 = vpop.f32.mrb[0].mxu0
  %v300 = vadd.f32 %v171, %v299
  %v301 = vpop.f32.mrb[0].mxu0
  %302 = vdwg.mxu0
  %v303 = vmax.f32 %v265, 0.0
  %v304 = vmax.f32 %v270, 0.0
  %v305 = vmax.f32 %v275, 0.0
  %v306 = vmax.f32 %v280, 0.0
  %v307 = vmax.f32 %v285, 0.0
  %v308 = vmax.f32 %v290, 0.0
  %v309 = vmax.f32 %v295, 0.0
  %v310 = vmax.f32 %v300, 0.0
  %v311 = vld [vmem:[%s5] sm:$0xff]
  %v312 = vld [vmem:[%s5 + $0x8] sm:$0xff]
  %v313 = vld [vmem:[%s6] sm:$0x1]
  %v315 = vlaneseq
  %v316 = vshrl.u32 %v315, 7
  %v317 = vsub.s32 0, %v316
  %v318 = vrot.slane %v313, %v317
  %v321 = vsel %vm173, %v303, 0
  %v324 = vsel %vm173, %v304, 0
  %v327 = vsel %vm173, %v305, 0
  %v330 = vsel %vm173, %v306, 0
  %v333 = vsel %vm173, %v307, 0
  %v336 = vsel %vm173, %v308, 0
  %v339 = vsel %vm173, %v309, 0
  %v342 = vsel %vm173, %v310, 0
  %344 = vmatprep.subr.mxu0 0.0
  %345 = vmatpush1.msra.mxu0 %v311
  %346 = vmatprep.subr.mxu0 0.0
  %347 = vmatpush1.msra.mxu0 %v312
  %348 = vmatprep.subr.mxu0 0.0
  %349 = vmatpush1.msra.mxu0 0.0
  %350 = vmatprep.subr.mxu0 0.0
  %351 = vmatpush1.msra.mxu0 0.0
  %352 = vmatprep.subr.mxu0 0.0
  %353 = vmatpush1.msra.mxu0 0.0
  %354 = vmatprep.subr.mxu0 0.0
  %355 = vmatpush1.msra.mxu0 0.0
  %356 = vmatprep.subr.mxu0 0.0
  %357 = vmatpush1.msra.mxu0 0.0
  %358 = vmatprep.subr.mxu0 0.0
  %359 = vmatpush1.msra.mxu0 0.0
  %360 = vmatprep.subr.mxu0 0.0
  %361 = vmatpush1.msra.mxu0 0.0
  %362 = vmatprep.subr.mxu0 0.0
  %363 = vmatpush1.msra.mxu0 0.0
  %364 = vmatprep.subr.mxu0 0.0
  %365 = vmatpush1.msra.mxu0 0.0
  %366 = vmatprep.subr.mxu0 0.0
  %367 = vmatpush1.msra.mxu0 0.0
  %368 = vmatprep.subr.mxu0 0.0
  %369 = vmatpush1.msra.mxu0 0.0
  %370 = vmatprep.subr.mxu0 0.0
  %371 = vmatpush1.msra.mxu0 0.0
  %372 = vmatprep.subr.mxu0 0.0
  %373 = vmatpush1.msra.mxu0 0.0
  %374 = vmatprep.subr.mxu0 0.0
  %375 = vmatpush1.msra.mxu0 0.0
  %376 = vmatprep.subr.mxu0 0.0
  %377 = vmatpush1.msra.mxu0 0.0
  %378 = vmatprep.subr.mxu0 0.0
  %379 = vmatpush1.msra.mxu0 0.0
  %380 = vmatprep.subr.mxu0 0.0
  %381 = vmatpush1.msra.mxu0 0.0
  %382 = vmatprep.subr.mxu0 0.0
  %383 = vmatpush1.msra.mxu0 0.0
  %384 = vmatprep.subr.mxu0 0.0
  %385 = vmatpush1.msra.mxu0 0.0
  %386 = vmatprep.subr.mxu0 0.0
  %387 = vmatpush1.msra.mxu0 0.0
  %388 = vmatprep.subr.mxu0 0.0
  %389 = vmatpush1.msra.mxu0 0.0
  %390 = vmatprep.subr.mxu0 0.0
  %391 = vmatpush1.msra.mxu0 0.0
  %392 = vmatprep.subr.mxu0 0.0
  %393 = vmatpush1.msra.mxu0 0.0
  %394 = vmatprep.subr.mxu0 0.0
  %395 = vmatpush1.msra.mxu0 0.0
  %396 = vmatprep.subr.mxu0 0.0
  %397 = vmatpush1.msra.mxu0 0.0
  %398 = vmatprep.subr.mxu0 0.0
  %399 = vmatpush1.msra.mxu0 0.0
  %400 = vmatprep.subr.mxu0 0.0
  %401 = vmatpush1.msra.mxu0 0.0
  %402 = vmatprep.subr.mxu0 0.0
  %403 = vmatpush1.msra.mxu0 0.0
  %404 = vmatprep.subr.mxu0 0.0
  %405 = vmatpush1.msra.mxu0 0.0
  %406 = vmatprep.subr.mxu0 0.0
  %407 = vmatpush1.msra.mxu0 0.0
  %408 = vmatprep.mubr.f32.mxu0 0.0
  %409 = vmatmul.mubr.f32.gmra.mrb[0].mxu0 %v321
  %v410 = vpop.f32.mrb[0].mxu0
  %v411 = vadd.f32 %v318, %v410
  %v412 = vpop.f32.mrb[0].mxu0
  %413 = vmatprep.mubr.f32.mxu0 0.0
  %414 = vmatmul.mubr.f32.gmra.mrb[0].mxu0 %v324
  %v415 = vpop.f32.mrb[0].mxu0
  %v416 = vadd.f32 %v318, %v415
  %v417 = vpop.f32.mrb[0].mxu0
  %418 = vmatprep.mubr.f32.mxu0 0.0
  %419 = vmatmul.mubr.f32.gmra.mrb[0].mxu0 %v327
  %v420 = vpop.f32.mrb[0].mxu0
  %v421 = vadd.f32 %v318, %v420
  %v422 = vpop.f32.mrb[0].mxu0
  %423 = vmatprep.mubr.f32.mxu0 0.0
  %424 = vmatmul.mubr.f32.gmra.mrb[0].mxu0 %v330
  %v425 = vpop.f32.mrb[0].mxu0
  %v426 = vadd.f32 %v318, %v425
  %v427 = vpop.f32.mrb[0].mxu0
  %428 = vmatprep.mubr.f32.mxu0 0.0
  %429 = vmatmul.mubr.f32.gmra.mrb[0].mxu0 %v333
  %v430 = vpop.f32.mrb[0].mxu0
  %v431 = vadd.f32 %v318, %v430
  %v432 = vpop.f32.mrb[0].mxu0
  %433 = vmatprep.mubr.f32.mxu0 0.0
  %434 = vmatmul.mubr.f32.gmra.mrb[0].mxu0 %v336
  %v435 = vpop.f32.mrb[0].mxu0
  %v436 = vadd.f32 %v318, %v435
  %v437 = vpop.f32.mrb[0].mxu0
  %438 = vmatprep.mubr.f32.mxu0 0.0
  %439 = vmatmul.mubr.f32.gmra.mrb[0].mxu0 %v339
  %v440 = vpop.f32.mrb[0].mxu0
  %v441 = vadd.f32 %v318, %v440
  %v442 = vpop.f32.mrb[0].mxu0
  %443 = vmatprep.mubr.f32.mxu0 0.0
  %444 = vmatmul.mubr.f32.gmra.mrb[0].mxu0 %v342
  %v445 = vpop.f32.mrb[0].mxu0
  %v446 = vadd.f32 %v318, %v445
  %v447 = vpop.f32.mrb[0].mxu0
  %448 = vdwg.mxu0
  %v449 = vxor.u32 %v411, 2147483648
  %v450 = vxor.u32 %v416, 2147483648
  %v451 = vxor.u32 %v421, 2147483648
  %v452 = vxor.u32 %v426, 2147483648
  %v453 = vxor.u32 %v431, 2147483648
  %v454 = vxor.u32 %v436, 2147483648
  %v455 = vxor.u32 %v441, 2147483648
  %v456 = vxor.u32 %v446, 2147483648
  %v457 = vmul.f32 %v449, 1.442695
  %v458 = vpow.pop %v457
  %v459 = vmul.f32 %v450, 1.442695
  %v460 = vpow.pop %v459
  %v461 = vmul.f32 %v451, 1.442695
  %v462 = vpow.pop %v461
  %v463 = vmul.f32 %v452, 1.442695
  %v464 = vpow.pop %v463
  %v465 = vmul.f32 %v453, 1.442695
  %v466 = vpow.pop %v465
  %v467 = vmul.f32 %v454, 1.442695
  %v468 = vpow.pop %v467
  %v469 = vmul.f32 %v455, 1.442695
  %v470 = vpow.pop %v469
  %v471 = vmul.f32 %v456, 1.442695
  %v472 = vpow.pop %v471
  %v473 = vadd.f32 %v458, 1.0
  %v474 = vadd.f32 %v460, 1.0
  %v475 = vadd.f32 %v462, 1.0
  %v476 = vadd.f32 %v464, 1.0
  %v477 = vadd.f32 %v466, 1.0
  %v478 = vadd.f32 %v468, 1.0
  %v479 = vadd.f32 %v470, 1.0
  %v480 = vadd.f32 %v472, 1.0
  %v481 = vrcp.pop %v473
  %v482 = vmul.f32 1.0, %v481
  %v483 = vrcp.pop %v474
  %v484 = vmul.f32 1.0, %v483
  %v485 = vrcp.pop %v475
  %v486 = vmul.f32 1.0, %v485
  %v487 = vrcp.pop %v476
  %v488 = vmul.f32 1.0, %v487
  %v489 = vrcp.pop %v477
  %v490 = vmul.f32 1.0, %v489
  %v491 = vrcp.pop %v478
  %v492 = vmul.f32 1.0, %v491
  %v493 = vrcp.pop %v479
  %v494 = vmul.f32 1.0, %v493
  %v495 = vrcp.pop %v480
  %v496 = vmul.f32 1.0, %v495
  %vm497 = vcmask 64512
  %498 = vst.msk [vmem:[%s7] sm:$0xff] %vm497, %v482
  %499 = vst.msk [vmem:[%s7 + $0x8] sm:$0xff] %vm497, %v484
  %500 = vst.msk [vmem:[%s7 + $0x10] sm:$0xff] %vm497, %v486
  %501 = vst.msk [vmem:[%s7 + $0x18] sm:$0xff] %vm497, %v488
  %502 = vst.msk [vmem:[%s7 + $0x20] sm:$0xff] %vm497, %v490
  %503 = vst.msk [vmem:[%s7 + $0x28] sm:$0xff] %vm497, %v492
  %504 = vst.msk [vmem:[%s7 + $0x30] sm:$0xff] %vm497, %v494
  %505 = vst.msk [vmem:[%s7 + $0x38] sm:$0xff] %vm497, %v496
  // Predicated region
  $region30: #{tpu_custom_call.1} parent=0 // pred_check
    _
  $region31: #{tpu_custom_call.1} parent=0 // pred_check_branch
    %507 = sbr.rel (0) target = $region33
  $region32: #{tpu_custom_call.1} parent=0 // pred_region
    _
  $region33: #{tpu_custom_call.1} parent=0 // pred_fallthru
    _
  // Predicated region
  $region34: #{tpu_custom_call.1} parent=0 // pred_check
    _
  $region35: #{tpu_custom_call.1} parent=0 // pred_check_branch
    %509 = sbr.rel (0) target = $region37
  $region36: #{tpu_custom_call.1} parent=0 // pred_region
    _
  $region37: #{tpu_custom_call.1} parent=0 // pred_fallthru
    _

</llo_original>
